<compile_context>
chip_gen: v6e
topology: v6e:2x2x1
jax: 0.10.0
libtpu: 0.0.40
codegen_flags: <defaults>
</compile_context>

<pallas_src>
import jax
import jax.numpy as jnp
from jax.experimental import pallas as pl
from jax.experimental.pallas import tpu as pltpu


def _round_up(x, m):
    return (x + m - 1) // m * m


def _vmem_capacity_bytes():
    """Physical VMEM per TensorCore; conservative fallback if the query fails."""
    try:
        cap = getattr(pltpu.get_tpu_info(), "vmem_capacity_bytes", None)
        if cap:
            return int(cap)
    except Exception:
        pass
    return 64 * 1024 * 1024  # v7x-sized fallback: safe on every generation


def _choose_tile(n, itemsize, cap):
    """Row-tile height: as large as a generation-aware VMEM budget allows,
    capped at 512, multiple of 8, and >= 2 grid steps when n > 8 so a v7x chip
    can split the 'parallel' axis across both TensorCores."""
    budget = (cap * 5) // 8                 # ~80 MiB on 128-MiB parts, ~40 MiB on v7x
    # per row: 2x double-buffered native-dtype input + ~4 f32 (tm, n) temporaries
    bytes_per_row = n * (2 * itemsize + 16)
    tm = budget // max(bytes_per_row, 1)
    tm = max(8, min(512, (tm // 8) * 8))
    if tm >= n and n > 8:
        tm = max(8, _round_up(-(-n // 2), 8))     # split into (at least) two tiles
    return min(tm, _round_up(n, 8))


def contrastive_loss(scores, margin=0.0, max_violation=False, tile_rows=None):
    """scores: [N, N] similarity matrix (any float dtype) -> scalar f32 loss."""
    n = scores.shape[0]
    assert scores.shape == (n, n), "scores must be square"

    cap = _vmem_capacity_bytes()
    two_tc = cap <= 64 * 1024 * 1024          # v7x-class chip: 2 TCs per chip
    vmem_limit = int((cap * 3) // 4)          # ~96 MiB (v5e/v6e) / ~48 MiB (v7x)

    margin_f = jnp.asarray(margin, jnp.float32)
    try:
        margin_static = float(margin)          # None if margin is a traced scalar
    except Exception:
        margin_static = None

    diag = jnp.diagonal(scores).astype(jnp.float32)        # (n,)
    dshift = diag - margin_f                                # margin folded in (f32)
    dcol = dshift.reshape(n, 1)
    drow = dshift.reshape(1, n)

    tm = _choose_tile(n, jnp.dtype(scores.dtype).itemsize, cap)
    if tile_rows is not None:                               # explicit override (tests)
        tm = min(max(8, (int(tile_rows) // 8) * 8), _round_up(n, 8))
    num_tiles = pl.cdiv(n, tm)
    ragged = (n % tm) != 0

    in_specs = [
        pl.BlockSpec((tm, n), lambda i: (i, 0)),   # row tile of scores (native dtype)
        pl.BlockSpec((tm, 1), lambda i: (i, 0)),   # diag - margin, column slice
        pl.BlockSpec((1, n), lambda i: (0, 0)),    # diag - margin, full row (resident)
    ]

    # ------------------------------------------------------------------ sum path
    if not max_violation:
        def tile_sum(s_ref, dcol_ref, drow_ref):
            s = s_ref[...].astype(jnp.float32)
            cost = (jnp.maximum(s - dcol_ref[...], 0.0)
                    + jnp.maximum(s - drow_ref[...], 0.0))
            if ragged:  # drop garbage rows of the partial last block
                rows = (jax.lax.broadcasted_iota(jnp.int32, (tm, 1), 0)
                        + pl.program_id(0) * tm)
                cost = jnp.where(rows < n, cost, 0.0)
            return jnp.sum(cost, keepdims=True)              # (1, 1)

        if two_tc:
            # per-tile partials so the 'parallel' axis splits across both TCs
            def kernel(s_ref, dcol_ref, drow_ref, out_ref):
                out_ref[0] = tile_sum(s_ref, dcol_ref, drow_ref)

            partials = pl.pallas_call(
                kernel,
                out_shape=jax.ShapeDtypeStruct((num_tiles, 1, 1), jnp.float32),
                grid=(num_tiles,),
                in_specs=in_specs,
                out_specs=pl.BlockSpec((1, 1, 1), lambda i: (i, 0, 0)),
                compiler_params=pltpu.CompilerParams(
                    dimension_semantics=("parallel",),
                    vmem_limit_bytes=vmem_limit),
            )(scores, dcol, drow)
            total = jnp.sum(partials)
        else:
            # single TC: resident scalar accumulator, no per-step writeback
            def kernel(s_ref, dcol_ref, drow_ref, out_ref):
                @pl.when(pl.program_id(0) == 0)
                def _():
                    out_ref[...] = jnp.zeros_like(out_ref)
                out_ref[...] += tile_sum(s_ref, dcol_ref, drow_ref)

            total = pl.pallas_call(
                kernel,
                out_shape=jax.ShapeDtypeStruct((1, 1), jnp.float32),
                grid=(num_tiles,),
                in_specs=in_specs,
                out_specs=pl.BlockSpec((1, 1), lambda i: (0, 0)),
                compiler_params=pltpu.CompilerParams(
                    dimension_semantics=("arbitrary",),
                    vmem_limit_bytes=vmem_limit),
            )(scores, dcol, drow)[0, 0]

        # Remove the diagonal terms the kernel included.  This recomputes them
        # with the exact same f32 ops on the exact same values (s_ii == diag_i
        # after the in-kernel upcast), so the subtraction is bitwise-consistent.
        return total - 2.0 * jnp.sum(jnp.maximum(diag - dshift, 0.0))

    # --------------------------------------------------------- max_violation path
    need_diag_mask = (margin_static is None) or (margin_static > 0.0)

    def tile_max_stats(s_ref, dcol_ref, drow_ref):
        i = pl.program_id(0)
        s = s_ref[...].astype(jnp.float32)
        cost_s = jnp.maximum(s - dcol_ref[...], 0.0)
        cost_im = jnp.maximum(s - drow_ref[...], 0.0)
        rows = jax.lax.broadcasted_iota(jnp.int32, (tm, 1), 0) + i * tm
        keep = None
        if need_diag_mask:  # diag entries equal ~relu(margin); must be zeroed
            cols = jax.lax.broadcasted_iota(jnp.int32, (tm, n), 1)
            keep = cols != rows
        if ragged:          # drop garbage rows of the partial last block
            valid = rows < n
            keep = valid if keep is None else (keep & valid)
        if keep is not None:
            cost_s = jnp.where(keep, cost_s, 0.0)
            cost_im = jnp.where(keep, cost_im, 0.0)
        rowsum = jnp.sum(jnp.max(cost_s, axis=1, keepdims=True),
                         axis=0, keepdims=True)              # (1, 1)
        colmax = jnp.max(cost_im, axis=0, keepdims=True)      # (1, n)
        return rowsum, colmax

    if two_tc:
        def kernel(s_ref, dcol_ref, drow_ref, rowsum_ref, colmax_ref):
            rowsum, colmax = tile_max_stats(s_ref, dcol_ref, drow_ref)
            rowsum_ref[0] = rowsum
            colmax_ref[0] = colmax

        rowsums, colmaxes = pl.pallas_call(
            kernel,
            out_shape=(jax.ShapeDtypeStruct((num_tiles, 1, 1), jnp.float32),
                       jax.ShapeDtypeStruct((num_tiles, 1, n), jnp.float32)),
            grid=(num_tiles,),
            in_specs=in_specs,
            out_specs=(pl.BlockSpec((1, 1, 1), lambda i: (i, 0, 0)),
                       pl.BlockSpec((1, 1, n), lambda i: (i, 0, 0))),
            compiler_params=pltpu.CompilerParams(
                dimension_semantics=("parallel",),
                vmem_limit_bytes=vmem_limit),
        )(scores, dcol, drow)
        return jnp.sum(rowsums) + jnp.sum(jnp.max(colmaxes[:, 0, :], axis=0))

    # single TC: resident row-max-sum and column-max accumulators
    def kernel(s_ref, dcol_ref, drow_ref, rowsum_ref, colmax_ref):
        @pl.when(pl.program_id(0) == 0)
        def _():
            rowsum_ref[...] = jnp.zeros_like(rowsum_ref)
            colmax_ref[...] = jnp.zeros_like(colmax_ref)   # identity: costs >= 0
        rowsum, colmax = tile_max_stats(s_ref, dcol_ref, drow_ref)
        rowsum_ref[...] += rowsum
        colmax_ref[...] = jnp.maximum(colmax_ref[...], colmax)

    rowsum_out, colmax_out = pl.pallas_call(
        kernel,
        out_shape=(jax.ShapeDtypeStruct((1, 1), jnp.float32),
                   jax.ShapeDtypeStruct((1, n), jnp.float32)),
        grid=(num_tiles,),
        in_specs=in_specs,
        out_specs=(pl.BlockSpec((1, 1), lambda i: (0, 0)),
                   pl.BlockSpec((1, n), lambda i: (0, 0))),
        compiler_params=pltpu.CompilerParams(
            dimension_semantics=("arbitrary",),
            vmem_limit_bytes=vmem_limit),
    )(scores, dcol, drow)
    return rowsum_out[0, 0] + jnp.sum(colmax_out)


def _reference_loss(scores, margin=0.0, max_violation=False):
    n = scores.shape[0]
    diag = jnp.diag(scores).reshape(n, 1)
    cost_s = jnp.maximum(margin + scores - diag, 0.0)
    cost_im = jnp.maximum(margin + scores - diag.T, 0.0)
    eye = jnp.eye(n, dtype=bool)
    cost_s = jnp.where(eye, 0.0, cost_s)
    cost_im = jnp.where(eye, 0.0, cost_im)
    if max_violation:
        return jnp.sum(jnp.max(cost_s, axis=1)) + jnp.sum(jnp.max(cost_im, axis=0))
    return jnp.sum(cost_s) + jnp.sum(cost_im)


if __name__ == "__main__":
    key = jax.random.PRNGKey(0)
    N = 8
    scores = jax.random.normal(key, (N, N), dtype=jnp.float32)

    # Default module configuration: margin=0, max_violation=False.
    loss = jax.block_until_ready(
        contrastive_loss(scores, margin=0.0, max_violation=False))
    ref = _reference_loss(scores, margin=0.0, max_violation=False)
    assert jnp.allclose(loss, ref, atol=1e-3, rtol=1e-5), (loss, ref)

    # Multi-tile grid, nonzero margin, both reduction modes.
    scores2 = jax.random.normal(jax.random.PRNGKey(1), (16, 16), dtype=jnp.float32)
    for m, mv in [(0.2, False), (0.2, True)]:
        got = jax.block_until_ready(
            contrastive_loss(scores2, margin=m, max_violation=mv, tile_rows=8))
        want = _reference_loss(scores2, margin=m, max_violation=mv)
        assert jnp.allclose(got, want, atol=1e-3, rtol=1e-5), (m, mv, got, want)

    # Ragged last tile (N not a multiple of the tile): exercises in-kernel masking.
    scores3 = jax.random.normal(jax.random.PRNGKey(2), (20, 20), dtype=jnp.float32)
    for m, mv in [(0.2, False), (0.2, True)]:
        got = jax.block_until_ready(
            contrastive_loss(scores3, margin=m, max_violation=mv))
        want = _reference_loss(scores3, margin=m, max_violation=mv)
        assert jnp.allclose(got, want, atol=1e-3, rtol=1e-5), (m, mv, got, want)

    print("KERNEL_OK")
</pallas_src>

<mosaic_0001>
module attributes {stable_mosaic.version = 11 : i64} {
  func.func @kernel(%arg0: i32, %arg1: memref<8x8xf32, #tpu.memory_space<vmem>>, %arg2: memref<8x1xf32, #tpu.memory_space<vmem>>, %arg3: memref<1x8xf32, #tpu.memory_space<vmem>>, %arg4: memref<1x1x1xf32, #tpu.memory_space<vmem>>) attributes {dimension_semantics = [#tpu.dimension_semantics<parallel>], iteration_bounds = array<i64: 1>, scalar_prefetch = 0 : i64, scratch_operands = 0 : i64, tpu.core_type = #tpu.core_type<tc>, window_params = [{transform_indices = @transform_0, window_bounds = array<i64: 8, 8>}, {transform_indices = @transform_1, window_bounds = array<i64: 8, 1>}, {pipeline_mode = #tpu.pipeline_mode<synchronous>, transform_indices = @transform_2, window_bounds = array<i64: 1, 8>}, {transform_indices = @transform_3, window_bounds = array<i64: 1, 1, 1>}]} {
    %c0 = arith.constant 0 : index
    %c0_0 = arith.constant 0 : index
    %0 = vector.load %arg1[%c0, %c0_0] : memref<8x8xf32, #tpu.memory_space<vmem>>, vector<8x8xf32>
    %c0_1 = arith.constant 0 : index
    %c0_2 = arith.constant 0 : index
    %1 = vector.load %arg2[%c0_1, %c0_2] : memref<8x1xf32, #tpu.memory_space<vmem>>, vector<8x1xf32>
    %2 = vector.broadcast %1 : vector<8x1xf32> to vector<8x8xf32>
    %3 = arith.subf %0, %2 : vector<8x8xf32>
    %cst = arith.constant 0.000000e+00 : f32
    %4 = vector.broadcast %cst : f32 to vector<8x8xf32>
    %5 = arith.maximumf %3, %4 : vector<8x8xf32>
    %c0_3 = arith.constant 0 : index
    %c0_4 = arith.constant 0 : index
    %6 = vector.load %arg3[%c0_3, %c0_4] : memref<1x8xf32, #tpu.memory_space<vmem>>, vector<1x8xf32>
    %7 = vector.broadcast %6 : vector<1x8xf32> to vector<8x8xf32>
    %8 = arith.subf %0, %7 : vector<8x8xf32>
    %cst_5 = arith.constant 0.000000e+00 : f32
    %9 = vector.broadcast %cst_5 : f32 to vector<8x8xf32>
    %10 = arith.maximumf %8, %9 : vector<8x8xf32>
    %11 = arith.addf %5, %10 : vector<8x8xf32>
    %12 = vector.shape_cast %11 : vector<8x8xf32> to vector<1x8x8xf32>
    %cst_6 = arith.constant dense<0.000000e+00> : vector<1xf32>
    %13 = vector.multi_reduction <add>, %12, %cst_6 [1, 2] : vector<1x8x8xf32> to vector<1xf32>
    %14 = vector.shape_cast %13 : vector<1xf32> to vector<1x1x1xf32>
    %15 = vector.extract %14[0, 0, 0] : f32 from vector<1x1x1xf32>
    %16 = vector.broadcast %15 : f32 to vector<1x1xf32>
    %c0_7 = arith.constant 0 : index
    %c0_8 = arith.constant 0 : index
    %c0_9 = arith.constant 0 : index
    %17 = vector.load %arg4[%c0_7, %c0_8, %c0_9] : memref<1x1x1xf32, #tpu.memory_space<vmem>>, vector<1x1x1xf32>
    %18 = vector.shape_cast %17 : vector<1x1x1xf32> to vector<1x1xf32>
    %19 = vector.shape_cast %16 : vector<1x1xf32> to vector<1x1x1xf32>
    tpu.vector_store %arg4[%c0_7, %c0_8, %c0_9], %19 {strides = array<i32>} : memref<1x1x1xf32, #tpu.memory_space<vmem>>, vector<1x1x1xf32>,
    return
  }
  func.func @transform_0(%arg0: i32) -> (i32, i32) {
    %c0_i32 = arith.constant 0 : i32
    %c0_i32_0 = arith.constant 0 : i32
    return %arg0, %c0_i32 : i32, i32
  }
  func.func @transform_1(%arg0: i32) -> (i32, i32) {
    %c0_i32 = arith.constant 0 : i32
    %c0_i32_0 = arith.constant 0 : i32
    return %arg0, %c0_i32 : i32, i32
  }
  func.func @transform_2(%arg0: i32) -> (i32, i32) {
    %c0_i32 = arith.constant 0 : i32
    %c0_i32_0 = arith.constant 0 : i32
    %c0_i32_1 = arith.constant 0 : i32
    return %c0_i32, %c0_i32_0 : i32, i32
  }
  func.func @transform_3(%arg0: i32) -> (i32, i32, i32) {
    %c0_i32 = arith.constant 0 : i32
    %c0_i32_0 = arith.constant 0 : i32
    %c0_i32_1 = arith.constant 0 : i32
    return %arg0, %c0_i32, %c0_i32_0 : i32, i32, i32
  }
}

</mosaic_0001>

<llo_original>
// kernel: tpu_custom_call.1
$region0: #{tpu_custom_call.1}
  #allocation0 [shape = 'u32[]', space=smem, size = 0x4, offset = 0x4, fixed_abs, tag = 'smem constant byte address 0x4 - core index']
  #allocation1 [shape = 'u32[144,128]{1,0:T(1,128)}', space=vmem, size = 0x12000, scoped, tag = 'internal scratch']
  %s0 = inlined_call_operand.vmem [shape: f32[8,8], index: 0, kind: input, shape index: {}]
  %s1 = inlined_call_operand.vmem [shape: f32[8,1], index: 1, kind: input, shape index: {}]
  %s2 = inlined_call_operand.vmem [shape: f32[1,8], index: 2, kind: input, shape index: {}]
  %s3 = inlined_call_operand.hbm [shape: f32[1,1,1], index: 3, kind: output, shape index: {}]
  %s4 = sld [smem:[#allocation0]]
  $region22: #{tpu_custom_call.1} parent=0
    _
  %s6 = ssub.s32 1, %s4
  %s7 = scalar_select 0, %s6, %s4
  $region1: #{tpu_custom_call.1} parent=0
    #allocation2 [shape = 'u8[512]{0}', space=vmem, size = 0x400, scoped, tag = 'output window, operand 0, single buffered']
    #allocation3 [shape = 's32[1]{0}', space=sflag, size = 0x4, scoped, tag = 'scoped memory for tpu_custom_call.1']
    %8 = vsyncpa [#allocation3], 0
    // Predicated region
    $region2: #{tpu_custom_call.1} parent=1 // pred_check
      _
    $region3: #{tpu_custom_call.1} parent=1 // pred_check_branch
      %10 = sbr.rel (0) target = $region5
    $region4: #{tpu_custom_call.1} parent=1 // pred_region
      _
    $region5: #{tpu_custom_call.1} parent=1 // pred_fallthru
      _
    // Predicated region
    $region6: #{tpu_custom_call.1} parent=1 // pred_check
      _
    $region7: #{tpu_custom_call.1} parent=1 // pred_check_branch
      %12 = sbr.rel (0) target = $region9
    $region8: #{tpu_custom_call.1} parent=1 // pred_region
      _
    $region9: #{tpu_custom_call.1} parent=1 // pred_fallthru
      _
    // Predicated region
    $region10: #{tpu_custom_call.1} parent=1 // pred_check
      _
    $region11: #{tpu_custom_call.1} parent=1 // pred_check_branch
      %14 = sbr.rel (0) target = $region13
    $region12: #{tpu_custom_call.1} parent=1 // pred_region
      _
    $region13: #{tpu_custom_call.1} parent=1 // pred_fallthru
      _
    %v15 = vld [vmem:[%s0] sm:$0xff]
    %v16 = vld [vmem:[%s1] sm:$0xff]
    %18 = vset.pattern.permute.xlu0 0
    %19 = vperm.xlu0 %18, %v16
    %v20 = vpop.permute.xlu0 %19
    %v22 = vsub.f32 %v15, %v20
    %v23 = vmax.f32 %v22, 0.0
    %v24 = vld [vmem:[%s2] sm:$0x1]
    %v26 = vlaneseq
    %v27 = vshrl.u32 %v26, 7
    %v28 = vsub.s32 0, %v27
    %v29 = vrot.slane %v24, %v28
    %v31 = vsub.f32 %v15, %v29
    %v32 = vmax.f32 %v31, 0.0
    %v33 = vadd.f32 %v23, %v32
    %vm34 = vcmask 64512
    %v35 = vsel %vm34, %v33, 0.0
    %36 = vadd.xlane.f32.xlu0 %v35
    %v37 = vpop.xlane.xlu0 %36
    %v38 = vrot.slane %v37, 4
    %v39 = vadd.f32 %v37, %v38
    %v40 = vrot.slane %v39, 2
    %v41 = vadd.f32 %v39, %v40
    %v42 = vrot.slane %v41, 1
    %v43 = vadd.f32 %v41, %v42
    %s44 = vtos %v43
    %v45 = vstv %s44
    %vm46 = vcmask 0
    %47 = vst.msk [vmem:[#allocation2] sm:$0x1] %vm46, %v45
    // Predicated region
    $region14: #{tpu_custom_call.1} parent=1 // pred_check
      _
    $region15: #{tpu_custom_call.1} parent=1 // pred_check_branch
      %49 = sbr.rel (0) target = $region17
    $region16: #{tpu_custom_call.1} parent=1 // pred_region
      %s51 = ssub.s32 16, 16
      %52 = vsyncadd [#allocation3], %s51
      %s54 = sshll.u32 [#allocation2], 4
      %s55 = int_to_ptr.vmem [resolvable:$true] %s54
      %57 = dma.vmem_to_hbm [thread:$0]  %s55, 16, %s3, [#allocation3]
    $region17: #{tpu_custom_call.1} parent=1 // pred_fallthru
      _
    // Predicated region
    $region18: #{tpu_custom_call.1} parent=1 // pred_check
      _
    $region19: #{tpu_custom_call.1} parent=1 // pred_check_branch
      %59 = sbr.rel (0) target = $region21
    $region20: #{tpu_custom_call.1} parent=1 // pred_region
      %60 = dma.done [#allocation3], 16
    $region21: #{tpu_custom_call.1} parent=1 // pred_fallthru
      _
    %61 = vsyncpa [#allocation3], 1

</llo_original>
